<compile_context>
chip_gen: v5e
topology: v5e:2x2
jax: 0.10.0
libtpu: 0.0.40
codegen_flags: <defaults>
</compile_context>

<pallas_src>
import functools
import math

import jax
import jax.numpy as jnp
import numpy as np
from jax.experimental import pallas as pl
from jax.experimental.pallas import tpu as pltpu

_LANE = 128


def _multibox_loss_kernel(logits_ref, rout_ref, tgt_ref, closs_ref, rloss_ref,
                          *, rows, inv_n64, pad_ln2):
    """logits_ref: (2*rows, 128), rout_ref: (4*rows, 128), tgt_ref: (5*rows, 128),
    closs_ref / rloss_ref: (1, 1) f32."""
    r = rows
    f32 = jnp.float32

    l0 = logits_ref[0:r, :].astype(f32)          # class-0 logits, (r, 128)
    l1 = logits_ref[r:2 * r, :].astype(f32)      # class-1 logits, (r, 128)
    cls = tgt_ref[0:r, :].astype(f32)            # labels in {0., 1.}, (r, 128)

    # --- 2-class cross entropy via stable softplus identity ----------------
    # ce = lse(l0, l1) - l_true = softplus((1 - 2*cls) * (l1 - l0)).
    # Padded anchors (l0 = l1 = cls = 0) each contribute exactly ln(2); that
    # is removed by the compile-time pad_ln2 constant (no per-element mask).
    t = (1.0 - 2.0 * cls) * (l1 - l0)
    ce = jnp.maximum(t, 0.0) + jnp.log(1.0 + jnp.exp(-jnp.abs(t)))
    ce_sum = jnp.sum(ce, keepdims=True)                          # (1, 1)
    closs_ref[...] = (ce_sum - pad_ln2) * inv_n64                # mean / 64

    # --- SmoothL1 (beta=1) over positive anchors ----------------------------
    # Branchless Huber: q = min(|d|, 1); huber = q * (|d| - 0.5 * q).
    # Padded rout/diff rows are zero, so they contribute nothing.
    sl1 = jnp.zeros((r, _LANE), f32)
    for j in range(4):
        d = (rout_ref[j * r:(j + 1) * r, :].astype(f32)
             - tgt_ref[(j + 1) * r:(j + 2) * r, :].astype(f32))
        ad = jnp.abs(d)
        q = jnp.minimum(ad, 1.0)
        sl1 = sl1 + q * (ad - 0.5 * q)

    pos = (cls == 1.0).astype(f32)               # padded lanes have cls == 0
    num_pos = jnp.sum(pos, keepdims=True)        # (1, 1)
    rsum = jnp.sum(sl1 * pos, keepdims=True)     # (1, 1)
    # Guarded denominator: no 0/0 NaN even in the unselected branch.
    rloss_ref[...] = jnp.where(num_pos > 0.0,
                               rsum / (jnp.maximum(num_pos, 1.0) * 4.0),
                               jnp.zeros_like(rsum)) * (1.0 / 16.0)


@jax.jit
def multibox_loss(cout, rout, targets):
    """cout: (1, 2k, H, W), rout: (1, 4k, H, W), targets: (N, 5), N = k*H*W.

    Labels targets[:, 0] must be exactly 0.0 or 1.0 (no -1 'ignore' class).
    """
    assert cout.shape[0] == 1, "per-image loss: leading batch dim must be 1"
    n = int(np.prod(cout.shape)) // 2
    assert int(np.prod(rout.shape)) == 4 * n and targets.shape == (n, 5)

    # Same reshapes as the PyTorch forward (dtype preserved; upcast in-kernel).
    cout2 = cout.reshape(2, n)          # row 0: class-0 logits, row 1: class-1
    rout_t = rout.reshape(n, 4).T       # (4, N), component-major
    tgt_t = targets.T                   # (5, N): row 0 = cls, rows 1..4 = diff

    # Pad the anchor axis so `rows` is a multiple of the sublane packing of the
    # narrowest input dtype: 8 for f32, 16 for bf16/f16, 32 for 8-bit.  This
    # keeps every static sublane slice in the kernel tile-aligned.
    min_item = min(jnp.dtype(x.dtype).itemsize for x in (cout, rout, targets))
    pad_multiple = 8 * (4 // min_item) * _LANE
    n_pad = ((n + pad_multiple - 1) // pad_multiple) * pad_multiple
    rows = n_pad // _LANE
    pad = n_pad - n

    def dense(x):
        # (c, N) -> zero-pad -> (c * rows, 128); anchor i lands at
        # (row = block*rows + i // 128, lane = i % 128).  Zero fill is load-
        # bearing: the CE pad correction assumes padded logits/labels are 0.
        x = jnp.pad(x, ((0, 0), (0, pad)))
        return x.reshape(x.shape[0] * rows, _LANE)

    logits_d = dense(cout2)   # (2*rows, 128)
    rout_d = dense(rout_t)    # (4*rows, 128)
    tgt_d = dense(tgt_t)      # (5*rows, 128)

    vmem = pl.BlockSpec(memory_space=pltpu.MemorySpace.VMEM)
    kernel = functools.partial(_multibox_loss_kernel,
                               rows=rows,
                               inv_n64=1.0 / (float(n) * 64.0),
                               pad_ln2=float(pad) * math.log(2.0))
    closs, rloss = pl.pallas_call(
        kernel,
        out_shape=(jax.ShapeDtypeStruct((1, 1), jnp.float32),
                   jax.ShapeDtypeStruct((1, 1), jnp.float32)),
        in_specs=[vmem, vmem, vmem],
        out_specs=(vmem, vmem),
    )(logits_d, rout_d, tgt_d)
    return closs[0, 0], rloss[0, 0]


def _reference_loss(cout, rout, targets):
    # Pure-JAX reproduction of the PyTorch forward (for validation).
    cout2 = cout.reshape(2, -1).astype(jnp.float32)
    logits = cout2.T                                           # (N, 2)
    cls = targets[:, 0].astype(jnp.int32)
    lse = jax.scipy.special.logsumexp(logits, axis=1)
    sel = jnp.take_along_axis(logits, cls[:, None], axis=1)[:, 0]
    closs = jnp.mean(lse - sel)

    rout2 = rout.reshape(-1, 4).astype(jnp.float32)
    diff = targets[:, 1:].astype(jnp.float32)
    d = rout2 - diff
    sl1 = jnp.where(jnp.abs(d) < 1.0, 0.5 * d * d, jnp.abs(d) - 0.5)
    pos = (cls == 1)
    npos = jnp.sum(pos)
    rloss = jnp.where(npos > 0,
                      jnp.sum(sl1 * pos[:, None]) / (jnp.maximum(npos, 1).astype(jnp.float32) * 4.0),
                      0.0)
    return closs / 64.0, rloss / 16.0


if __name__ == "__main__":
    key = jax.random.PRNGKey(0)
    k_anchors, H, W = 5, 7, 7
    N = k_anchors * H * W                                      # 245 anchors (not a multiple of 128)

    k1, k2, k3, k4 = jax.random.split(key, 4)
    cout = jax.random.normal(k1, (1, 2 * k_anchors, H, W), dtype=jnp.float32)
    rout = jax.random.normal(k2, (1, 4 * k_anchors, H, W), dtype=jnp.float32)

    # targets[:, 0] in {0, 1} (guarantee at least one positive), targets[:, 1:] reg deltas.
    labels = jax.random.bernoulli(k3, 0.25, (N,)).astype(jnp.float32)
    labels = labels.at[0].set(1.0)
    deltas = jax.random.normal(k4, (N, 4), dtype=jnp.float32)
    targets = jnp.concatenate([labels[:, None], deltas], axis=1)  # (N, 5)

    closs, rloss = multibox_loss(cout, rout, targets)
    jax.block_until_ready((closs, rloss))

    closs_ref, rloss_ref = _reference_loss(cout, rout, targets)
    np.testing.assert_allclose(np.asarray(closs), np.asarray(closs_ref),
                               rtol=1e-5, atol=1e-6)
    np.testing.assert_allclose(np.asarray(rloss), np.asarray(rloss_ref),
                               rtol=1e-5, atol=1e-6)

    # Also exercise the num_pos == 0 path (guarded: must be exactly 0, no NaN).
    targets_neg = targets.at[:, 0].set(0.0)
    closs2, rloss2 = multibox_loss(cout, rout, targets_neg)
    jax.block_until_ready((closs2, rloss2))
    closs2_ref, rloss2_ref = _reference_loss(cout, rout, targets_neg)
    np.testing.assert_allclose(np.asarray(closs2), np.asarray(closs2_ref),
                               rtol=1e-5, atol=1e-6)
    np.testing.assert_allclose(np.asarray(rloss2), 0.0, atol=1e-7)

    print("KERNEL_OK")
</pallas_src>

<mosaic_0001>
module attributes {stable_mosaic.version = 11 : i64} {
  func.func @_multibox_loss_kernel(%arg0: memref<16x128xf32, #tpu.memory_space<vmem>>, %arg1: memref<32x128xf32, #tpu.memory_space<vmem>>, %arg2: memref<40x128xf32, #tpu.memory_space<vmem>>, %arg3: memref<1x1xf32, #tpu.memory_space<vmem>>, %arg4: memref<1x1xf32, #tpu.memory_space<vmem>>) attributes {dimension_semantics = [], scalar_prefetch = 0 : i64, scratch_operands = 0 : i64, tpu.core_type = #tpu.core_type<tc>} {
    %c0 = arith.constant 0 : index
    %c0_0 = arith.constant 0 : index
    %0 = vector.load %arg0[%c0, %c0_0] : memref<16x128xf32, #tpu.memory_space<vmem>>, vector<8x128xf32>
    %c8 = arith.constant 8 : index
    %c0_1 = arith.constant 0 : index
    %1 = vector.load %arg0[%c8, %c0_1] : memref<16x128xf32, #tpu.memory_space<vmem>>, vector<8x128xf32>
    %c0_2 = arith.constant 0 : index
    %c0_3 = arith.constant 0 : index
    %2 = vector.load %arg2[%c0_2, %c0_3] : memref<40x128xf32, #tpu.memory_space<vmem>>, vector<8x128xf32>
    %cst = arith.constant 2.000000e+00 : f32
    %3 = vector.broadcast %cst : f32 to vector<8x128xf32>
    %4 = arith.mulf %3, %2 : vector<8x128xf32>
    %cst_4 = arith.constant 1.000000e+00 : f32
    %5 = vector.broadcast %cst_4 : f32 to vector<8x128xf32>
    %6 = arith.subf %5, %4 : vector<8x128xf32>
    %7 = arith.subf %1, %0 : vector<8x128xf32>
    %8 = arith.mulf %6, %7 : vector<8x128xf32>
    %cst_5 = arith.constant 0.000000e+00 : f32
    %9 = vector.broadcast %cst_5 : f32 to vector<8x128xf32>
    %10 = arith.maximumf %8, %9 : vector<8x128xf32>
    %11 = math.absf %8 : vector<8x128xf32>
    %cst_6 = arith.constant 0.000000e+00 : f32
    %12 = vector.broadcast %cst_6 : f32 to vector<8x128xf32>
    %13 = arith.subf %12, %11 : vector<8x128xf32>
    %14 = math.exp %13 : vector<8x128xf32>
    %cst_7 = arith.constant 1.000000e+00 : f32
    %15 = vector.broadcast %cst_7 : f32 to vector<8x128xf32>
    %16 = arith.addf %15, %14 : vector<8x128xf32>
    %17 = math.log %16 : vector<8x128xf32>
    %18 = arith.addf %10, %17 : vector<8x128xf32>
    %19 = vector.shape_cast %18 : vector<8x128xf32> to vector<1x8x128xf32>
    %cst_8 = arith.constant dense<0.000000e+00> : vector<1xf32>
    %20 = vector.multi_reduction <add>, %19, %cst_8 [1, 2] : vector<1x8x128xf32> to vector<1xf32>
    %21 = vector.shape_cast %20 : vector<1xf32> to vector<1x1x1xf32>
    %22 = vector.extract %21[0, 0, 0] : f32 from vector<1x1x1xf32>
    %23 = vector.broadcast %22 : f32 to vector<1x1xf32>
    %cst_9 = arith.constant 539.96167 : f32
    %24 = vector.broadcast %cst_9 : f32 to vector<1x1xf32>
    %25 = arith.subf %23, %24 : vector<1x1xf32>
    %cst_10 = arith.constant 6.37755074E-5 : f32
    %26 = vector.broadcast %cst_10 : f32 to vector<1x1xf32>
    %27 = arith.mulf %25, %26 : vector<1x1xf32>
    %c0_11 = arith.constant 0 : index
    %c0_12 = arith.constant 0 : index
    %28 = vector.load %arg3[%c0_11, %c0_12] : memref<1x1xf32, #tpu.memory_space<vmem>>, vector<1x1xf32>
    tpu.vector_store %arg3[%c0_11, %c0_12], %27 {strides = array<i32>} : memref<1x1xf32, #tpu.memory_space<vmem>>, vector<1x1xf32>,
    %cst_13 = arith.constant 0.000000e+00 : f32
    %29 = vector.broadcast %cst_13 : f32 to vector<8x128xf32>
    %c0_14 = arith.constant 0 : index
    %c0_15 = arith.constant 0 : index
    %30 = vector.load %arg1[%c0_14, %c0_15] : memref<32x128xf32, #tpu.memory_space<vmem>>, vector<8x128xf32>
    %c8_16 = arith.constant 8 : index
    %c0_17 = arith.constant 0 : index
    %31 = vector.load %arg2[%c8_16, %c0_17] : memref<40x128xf32, #tpu.memory_space<vmem>>, vector<8x128xf32>
    %32 = arith.subf %30, %31 : vector<8x128xf32>
    %33 = math.absf %32 : vector<8x128xf32>
    %cst_18 = arith.constant 1.000000e+00 : f32
    %34 = vector.broadcast %cst_18 : f32 to vector<8x128xf32>
    %35 = arith.minimumf %33, %34 : vector<8x128xf32>
    %cst_19 = arith.constant 5.000000e-01 : f32
    %36 = vector.broadcast %cst_19 : f32 to vector<8x128xf32>
    %37 = arith.mulf %36, %35 : vector<8x128xf32>
    %38 = arith.subf %33, %37 : vector<8x128xf32>
    %39 = arith.mulf %35, %38 : vector<8x128xf32>
    %40 = arith.addf %29, %39 : vector<8x128xf32>
    %c8_20 = arith.constant 8 : index
    %c0_21 = arith.constant 0 : index
    %41 = vector.load %arg1[%c8_20, %c0_21] : memref<32x128xf32, #tpu.memory_space<vmem>>, vector<8x128xf32>
    %c16 = arith.constant 16 : index
    %c0_22 = arith.constant 0 : index
    %42 = vector.load %arg2[%c16, %c0_22] : memref<40x128xf32, #tpu.memory_space<vmem>>, vector<8x128xf32>
    %43 = arith.subf %41, %42 : vector<8x128xf32>
    %44 = math.absf %43 : vector<8x128xf32>
    %cst_23 = arith.constant 1.000000e+00 : f32
    %45 = vector.broadcast %cst_23 : f32 to vector<8x128xf32>
    %46 = arith.minimumf %44, %45 : vector<8x128xf32>
    %cst_24 = arith.constant 5.000000e-01 : f32
    %47 = vector.broadcast %cst_24 : f32 to vector<8x128xf32>
    %48 = arith.mulf %47, %46 : vector<8x128xf32>
    %49 = arith.subf %44, %48 : vector<8x128xf32>
    %50 = arith.mulf %46, %49 : vector<8x128xf32>
    %51 = arith.addf %40, %50 : vector<8x128xf32>
    %c16_25 = arith.constant 16 : index
    %c0_26 = arith.constant 0 : index
    %52 = vector.load %arg1[%c16_25, %c0_26] : memref<32x128xf32, #tpu.memory_space<vmem>>, vector<8x128xf32>
    %c24 = arith.constant 24 : index
    %c0_27 = arith.constant 0 : index
    %53 = vector.load %arg2[%c24, %c0_27] : memref<40x128xf32, #tpu.memory_space<vmem>>, vector<8x128xf32>
    %54 = arith.subf %52, %53 : vector<8x128xf32>
    %55 = math.absf %54 : vector<8x128xf32>
    %cst_28 = arith.constant 1.000000e+00 : f32
    %56 = vector.broadcast %cst_28 : f32 to vector<8x128xf32>
    %57 = arith.minimumf %55, %56 : vector<8x128xf32>
    %cst_29 = arith.constant 5.000000e-01 : f32
    %58 = vector.broadcast %cst_29 : f32 to vector<8x128xf32>
    %59 = arith.mulf %58, %57 : vector<8x128xf32>
    %60 = arith.subf %55, %59 : vector<8x128xf32>
    %61 = arith.mulf %57, %60 : vector<8x128xf32>
    %62 = arith.addf %51, %61 : vector<8x128xf32>
    %c24_30 = arith.constant 24 : index
    %c0_31 = arith.constant 0 : index
    %63 = vector.load %arg1[%c24_30, %c0_31] : memref<32x128xf32, #tpu.memory_space<vmem>>, vector<8x128xf32>
    %c32 = arith.constant 32 : index
    %c0_32 = arith.constant 0 : index
    %64 = vector.load %arg2[%c32, %c0_32] : memref<40x128xf32, #tpu.memory_space<vmem>>, vector<8x128xf32>
    %65 = arith.subf %63, %64 : vector<8x128xf32>
    %66 = math.absf %65 : vector<8x128xf32>
    %cst_33 = arith.constant 1.000000e+00 : f32
    %67 = vector.broadcast %cst_33 : f32 to vector<8x128xf32>
    %68 = arith.minimumf %66, %67 : vector<8x128xf32>
    %cst_34 = arith.constant 5.000000e-01 : f32
    %69 = vector.broadcast %cst_34 : f32 to vector<8x128xf32>
    %70 = arith.mulf %69, %68 : vector<8x128xf32>
    %71 = arith.subf %66, %70 : vector<8x128xf32>
    %72 = arith.mulf %68, %71 : vector<8x128xf32>
    %73 = arith.addf %62, %72 : vector<8x128xf32>
    %cst_35 = arith.constant 1.000000e+00 : f32
    %74 = vector.broadcast %cst_35 : f32 to vector<8x128xf32>
    %75 = arith.cmpf oeq, %2, %74 : vector<8x128xf32>
    %76 = arith.extui %75 : vector<8x128xi1> to vector<8x128xi32>
    %77 = arith.sitofp %76 : vector<8x128xi32> to vector<8x128xf32>
    %78 = vector.shape_cast %77 : vector<8x128xf32> to vector<1x8x128xf32>
    %cst_36 = arith.constant dense<0.000000e+00> : vector<1xf32>
    %79 = vector.multi_reduction <add>, %78, %cst_36 [1, 2] : vector<1x8x128xf32> to vector<1xf32>
    %80 = vector.shape_cast %79 : vector<1xf32> to vector<1x1x1xf32>
    %81 = vector.extract %80[0, 0, 0] : f32 from vector<1x1x1xf32>
    %82 = vector.broadcast %81 : f32 to vector<1x1xf32>
    %83 = arith.mulf %73, %77 : vector<8x128xf32>
    %84 = vector.shape_cast %83 : vector<8x128xf32> to vector<1x8x128xf32>
    %cst_37 = arith.constant dense<0.000000e+00> : vector<1xf32>
    %85 = vector.multi_reduction <add>, %84, %cst_37 [1, 2] : vector<1x8x128xf32> to vector<1xf32>
    %86 = vector.shape_cast %85 : vector<1xf32> to vector<1x1x1xf32>
    %87 = vector.extract %86[0, 0, 0] : f32 from vector<1x1x1xf32>
    %88 = vector.broadcast %87 : f32 to vector<1x1xf32>
    %cst_38 = arith.constant 0.000000e+00 : f32
    %89 = vector.broadcast %cst_38 : f32 to vector<1x1xf32>
    %90 = arith.cmpf ogt, %82, %89 : vector<1x1xf32>
    %cst_39 = arith.constant 1.000000e+00 : f32
    %91 = vector.broadcast %cst_39 : f32 to vector<1x1xf32>
    %92 = arith.maximumf %82, %91 : vector<1x1xf32>
    %cst_40 = arith.constant 4.000000e+00 : f32
    %93 = vector.broadcast %cst_40 : f32 to vector<1x1xf32>
    %94 = arith.mulf %92, %93 : vector<1x1xf32>
    %95 = arith.divf %88, %94 : vector<1x1xf32>
    %cst_41 = arith.constant 0.000000e+00 : f32
    %96 = vector.broadcast %cst_41 : f32 to vector<1x1xf32>
    %97 = arith.select %90, %95, %96 : vector<1x1xi1>, vector<1x1xf32>
    %cst_42 = arith.constant 6.250000e-02 : f32
    %98 = vector.broadcast %cst_42 : f32 to vector<1x1xf32>
    %99 = arith.mulf %97, %98 : vector<1x1xf32>
    %c0_43 = arith.constant 0 : index
    %c0_44 = arith.constant 0 : index
    %100 = vector.load %arg4[%c0_43, %c0_44] : memref<1x1xf32, #tpu.memory_space<vmem>>, vector<1x1xf32>
    tpu.vector_store %arg4[%c0_43, %c0_44], %99 {strides = array<i32>} : memref<1x1xf32, #tpu.memory_space<vmem>>, vector<1x1xf32>,
    return
  }
}

</mosaic_0001>

<llo_original>
// kernel: multibox_loss.1
$region0: #{multibox_loss.1}
  #allocation0 [shape = 'u32[]', space=smem, size = 0x4, offset = 0x4, fixed_abs, tag = 'smem constant byte address 0x4 - core index']
  #allocation1 [shape = 'u32[72,128]{1,0:T(1,128)}', space=vmem, size = 0x9000, scoped, tag = 'internal scratch']
  %s0 = inlined_call_operand.vmem [shape: f32[16,128], index: 0, kind: input, shape index: {}]
  %s1 = inlined_call_operand.vmem [shape: f32[32,128], index: 1, kind: input, shape index: {}]
  %s2 = inlined_call_operand.vmem [shape: f32[40,128], index: 2, kind: input, shape index: {}]
  %s3 = inlined_call_operand.hbm [shape: f32[1,1], index: 3, kind: output, shape index: {0}]
  %s4 = inlined_call_operand.hbm [shape: f32[1,1], index: 4, kind: output, shape index: {1}]
  %5 = xla_tuple %s3, %s4
  %s6 = sld [smem:[#allocation0]]
  $region30: #{multibox_loss.1} parent=0
    _
  %s8 = ssub.s32 1, %s6
  %s9 = scalar_select 0, %s8, %s6
  $region1: #{multibox_loss.1} parent=0
    #allocation2 [shape = 'u8[512]{0}', space=vmem, size = 0x400, scoped, tag = 'output window, operand 0, single buffered']
    #allocation3 [shape = 's32[1]{0}', space=sflag, size = 0x4, scoped, tag = 'scoped memory for multibox_loss.1']
    #allocation4 [shape = 'u8[512]{0}', space=vmem, size = 0x400, scoped, tag = 'output window, operand 1, single buffered']
    #allocation5 [shape = 's32[1]{0}', space=sflag, size = 0x4, scoped, tag = 'scoped memory for multibox_loss.1']
    %10 = vsyncpa [#allocation3], 0
    %11 = vsyncpa [#allocation5], 0
    // Predicated region
    $region2: #{multibox_loss.1} parent=1 // pred_check
      _
    $region3: #{multibox_loss.1} parent=1 // pred_check_branch
      %13 = sbr.rel (0) target = $region5
    $region4: #{multibox_loss.1} parent=1 // pred_region
      _
    $region5: #{multibox_loss.1} parent=1 // pred_fallthru
      _
    // Predicated region
    $region6: #{multibox_loss.1} parent=1 // pred_check
      _
    $region7: #{multibox_loss.1} parent=1 // pred_check_branch
      %15 = sbr.rel (0) target = $region9
    $region8: #{multibox_loss.1} parent=1 // pred_region
      _
    $region9: #{multibox_loss.1} parent=1 // pred_fallthru
      _
    // Predicated region
    $region10: #{multibox_loss.1} parent=1 // pred_check
      _
    $region11: #{multibox_loss.1} parent=1 // pred_check_branch
      %17 = sbr.rel (0) target = $region13
    $region12: #{multibox_loss.1} parent=1 // pred_region
      _
    $region13: #{multibox_loss.1} parent=1 // pred_fallthru
      _
    %v18 = vld [vmem:[%s0] sm:$0xff]
    %v19 = vld [vmem:[%s0 + $0x8] sm:$0xff]
    %v20 = vld [vmem:[%s2] sm:$0xff]
    %v21 = vmul.f32 %v20, 2.0
    %v22 = vsub.f32 1.0, %v21
    %v23 = vsub.f32 %v19, %v18
    %v24 = vmul.f32 %v22, %v23
    %v25 = vmax.f32 %v24, 0.0
    %v26 = vand.u32 2147483647, %v24
    %v27 = vsub.f32 0.0, %v26
    %v28 = vmul.f32 %v27, 1.442695
    %v29 = vpow.pop %v28
    %v30 = vadd.f32 %v29, 1.0
    %v31 = vlog2.pop %v30
    %v32 = vmul.f32 %v31, 0.6931472
    %v33 = vadd.f32 %v25, %v32
    %34 = vadd.xlane.f32.xlu0 %v33
    %v35 = vpop.xlane.xlu0 %34
    %v36 = vrot.slane %v35, 4
    %v37 = vadd.f32 %v35, %v36
    %v38 = vrot.slane %v37, 2
    %v39 = vadd.f32 %v37, %v38
    %v40 = vrot.slane %v39, 1
    %v41 = vadd.f32 %v39, %v40
    %s42 = vtos %v41
    %v43 = vstv %s42
    %v44 = vsub.f32 %v43, 539.9617
    %v45 = vmul.f32 %v44, 6.377551e-05
    %vm46 = vcmask 0
    %47 = vst.msk [vmem:[#allocation2] sm:$0x1] %vm46, %v45
    %v48 = vld [vmem:[%s1] sm:$0xff]
    %v49 = vld [vmem:[%s2 + $0x8] sm:$0xff]
    %v50 = vsub.f32 %v48, %v49
    %v51 = vand.u32 2147483647, %v50
    %v52 = vmin.f32 %v51, 1.0
    %v53 = vmul.f32 %v52, 0.5
    %v54 = vsub.f32 %v51, %v53
    %v55 = vmul.f32 %v52, %v54
    %v56 = vadd.f32 %v55, 0.0
    %v57 = vld [vmem:[%s1 + $0x8] sm:$0xff]
    %v58 = vld [vmem:[%s2 + $0x10] sm:$0xff]
    %v59 = vsub.f32 %v57, %v58
    %v60 = vand.u32 2147483647, %v59
    %v61 = vmin.f32 %v60, 1.0
    %v62 = vmul.f32 %v61, 0.5
    %v63 = vsub.f32 %v60, %v62
    %v64 = vmul.f32 %v61, %v63
    %v65 = vadd.f32 %v56, %v64
    %v66 = vld [vmem:[%s1 + $0x10] sm:$0xff]
    %v67 = vld [vmem:[%s2 + $0x18] sm:$0xff]
    %v68 = vsub.f32 %v66, %v67
    %v69 = vand.u32 2147483647, %v68
    %v70 = vmin.f32 %v69, 1.0
    %v71 = vmul.f32 %v70, 0.5
    %v72 = vsub.f32 %v69, %v71
    %v73 = vmul.f32 %v70, %v72
    %v74 = vadd.f32 %v65, %v73
    %v75 = vld [vmem:[%s1 + $0x18] sm:$0xff]
    %v76 = vld [vmem:[%s2 + $0x20] sm:$0xff]
    %v77 = vsub.f32 %v75, %v76
    %v78 = vand.u32 2147483647, %v77
    %v79 = vmin.f32 %v78, 1.0
    %v80 = vmul.f32 %v79, 0.5
    %v81 = vsub.f32 %v78, %v80
    %v82 = vmul.f32 %v79, %v81
    %v83 = vadd.f32 %v74, %v82
    %vm84 = vcmp.eq.f32.partialorder %v20, 1.0
    %v85 = vsel %vm84, 1, 0
    %v86 = vcvt.s32.f32 %v85
    %87 = vadd.xlane.f32.xlu0 %v86
    %v88 = vpop.xlane.xlu0 %87
    %v89 = vrot.slane %v88, 4
    %v90 = vadd.f32 %v88, %v89
    %v91 = vrot.slane %v90, 2
    %v92 = vadd.f32 %v90, %v91
    %v93 = vrot.slane %v92, 1
    %v94 = vadd.f32 %v92, %v93
    %s95 = vtos %v94
    %v96 = vstv %s95
    %v97 = vmul.f32 %v83, %v86
    %98 = vadd.xlane.f32.xlu0 %v97
    %v99 = vpop.xlane.xlu0 %98
    %v100 = vrot.slane %v99, 4
    %v101 = vadd.f32 %v99, %v100
    %v102 = vrot.slane %v101, 2
    %v103 = vadd.f32 %v101, %v102
    %v104 = vrot.slane %v103, 1
    %v105 = vadd.f32 %v103, %v104
    %s106 = vtos %v105
    %v107 = vstv %s106
    %vm108 = vcmp.gt.f32.partialorder %v96, 0.0
    %v109 = vmax.f32 %v96, 1.0
    %v110 = vmul.f32 %v109, 4.0
    %v111 = vrcp.pop %v110
    %v112 = vmul.f32 %v110, %v111
    %v113 = vsub.f32 1.0, %v112
    %v114 = vmul.f32 %v111, %v113
    %v115 = vadd.f32 %v111, %v114
    %vm116 = vweird.f32 %v110
    %vm117 = vweird.f32 %v111
    %vm118 = vmor %vm116, %vm117
    %v119 = vsel %vm118, %v111, %v115
    %v120 = vand.u32 2147483647, %v110
    %vm121 = vcmp.eq.f32.partialorder %v120, 8.507059e+37
    %v122 = vand.u32 %v110, 2147483648
    %v123 = vor.u32 1.1754944e-38, %v122
    %v124 = vsel %vm121, %v123, %v119
    %v125 = vmul.f32 %v107, %v124
    %v126 = vsel %vm108, %v125, 0.0
    %v127 = vmul.f32 %v126, 0.0625
    %128 = vst.msk [vmem:[#allocation4] sm:$0x1] %vm46, %v127
    // Predicated region
    $region14: #{multibox_loss.1} parent=1 // pred_check
      _
    $region15: #{multibox_loss.1} parent=1 // pred_check_branch
      %130 = sbr.rel (0) target = $region17
    $region16: #{multibox_loss.1} parent=1 // pred_region
      %132 = vsyncadd [#allocation3], 0
      %s134 = sshll.u32 [#allocation2], 4
      %s135 = int_to_ptr.vmem [resolvable:$true] %s134
      %s136 = sshll.u32 %s3, 4
      %s137 = int_to_ptr.hbm [resolvable:$true] %s136
      %139 = dma.vmem_to_hbm [thread:$0]  %s135, 16, %s137, [#allocation3]
    $region17: #{multibox_loss.1} parent=1 // pred_fallthru
      _
    // Predicated region
    $region18: #{multibox_loss.1} parent=1 // pred_check
      _
    $region19: #{multibox_loss.1} parent=1 // pred_check_branch
      %141 = sbr.rel (0) target = $region21
    $region20: #{multibox_loss.1} parent=1 // pred_region
      %143 = vsyncadd [#allocation5], 0
      %s145 = sshll.u32 [#allocation4], 4
      %s146 = int_to_ptr.vmem [resolvable:$true] %s145
      %s147 = sshll.u32 %s4, 4
      %s148 = int_to_ptr.hbm [resolvable:$true] %s147
      %150 = dma.vmem_to_hbm [thread:$0]  %s146, 16, %s148, [#allocation5]
    $region21: #{multibox_loss.1} parent=1 // pred_fallthru
      _
    // Predicated region
    $region22: #{multibox_loss.1} parent=1 // pred_check
      _
    $region23: #{multibox_loss.1} parent=1 // pred_check_branch
      %152 = sbr.rel (0) target = $region25
    $region24: #{multibox_loss.1} parent=1 // pred_region
      %154 = dma.done [#allocation3], 16
    $region25: #{multibox_loss.1} parent=1 // pred_fallthru
      _
    // Predicated region
    $region26: #{multibox_loss.1} parent=1 // pred_check
      _
    $region27: #{multibox_loss.1} parent=1 // pred_check_branch
      %156 = sbr.rel (0) target = $region29
    $region28: #{multibox_loss.1} parent=1 // pred_region
      %158 = dma.done [#allocation5], 16
    $region29: #{multibox_loss.1} parent=1 // pred_fallthru
      _
    %159 = vsyncpa [#allocation3], 1
    %160 = vsyncpa [#allocation5], 1

</llo_original>
